<compile_context>
chip_gen: v7x
topology: tpu7x:2x2x1
jax: 0.10.0
libtpu: 0.0.40
codegen_flags: <defaults>
</compile_context>

<pallas_src>
from functools import partial

import jax
import jax.numpy as jnp
from jax.experimental import pallas as pl
from jax.experimental.pallas import tpu as pltpu

_LANE = 128
_SUBLANE = 8
_PAD_BIAS = -1e30  # bias on lane-padding columns -> exp() == 0 in the softmax


def _round_up(x, m):
    return (x + m - 1) // m * m


def _fused_decoupled_linear_kernel(n_spaces, c_pad, approx_recip,
                                   x_ref, w_ref, b_ref, o_ref, acc_ref):
    """One (batch-tile, K-tile) grid step.

    x_ref  : (tb, bk)          VMEM  concatenated-feature K slice
    w_ref  : (bk, N*c_pad)     VMEM  block-diagonal weight K slice
    b_ref  : (1,  N*c_pad)     VMEM  biases (-1e30 on lane-padding columns)
    o_ref  : (tb, N*c_pad)     VMEM  per-space softmax probabilities
    acc_ref: (tb, N*c_pad)     VMEM  f32 accumulator scratch
    """
    k = pl.program_id(1)

    @pl.when(k == 0)
    def _():
        acc_ref[...] = jnp.zeros_like(acc_ref)

    # Single MXU matmul for all N spaces, f32 accumulation.
    acc_ref[...] += jnp.dot(x_ref[...], w_ref[...],
                            preferred_element_type=jnp.float32)

    @pl.when(k == pl.num_programs(1) - 1)
    def _():
        logits = acc_ref[...] + b_ref[...]                    # (tb, N*c_pad) f32
        # Numerically-stable softmax per C_pad-wide (128-aligned) lane group.
        # n_spaces is small and static, so this unrolls; every slice/store is
        # a whole lane group -> no masked stores, no concat temp.
        for i in range(n_spaces):
            seg = logits[:, i * c_pad:(i + 1) * c_pad]        # (tb, c_pad)
            m = jnp.max(seg, axis=-1, keepdims=True)
            e = jnp.exp(seg - m)                              # pad cols -> 0
            s = jnp.sum(e, axis=-1, keepdims=True)
            inv = pl.reciprocal(s, approx=approx_recip)       # EUP vrcp
            o_ref[:, i * c_pad:(i + 1) * c_pad] = (e * inv).astype(o_ref.dtype)


def prepare_decoupled_linear_params(weights, biases, num_clusters, *, dtype=None):
    """One-time packing of the torch-layout params (call per parameter update).

    weights: list of (C, D_i) nn.Linear.weight matrices, biases: list of (C,).
    Returns (w_big, b_big): block-diagonal weight (D_total, N*C_pad) and bias
    (1, N*C_pad) with -1e30 on the lane-padding columns.
    """
    n = len(weights)
    C = num_clusters
    dims = [int(w.shape[1]) for w in weights]
    D_total = sum(dims)
    c_pad = _round_up(C, _LANE)
    if dtype is None:
        # bf16 is MXU-native on v5e/v6e/v7x; keep f32 only for tiny D_total.
        dtype = jnp.bfloat16 if D_total >= 256 else jnp.float32

    w_big = jnp.zeros((D_total, n * c_pad), dtype=jnp.float32)
    off = 0
    for i, (w, d) in enumerate(zip(weights, dims)):
        w_big = w_big.at[off:off + d, i * c_pad:i * c_pad + C].set(
            jnp.asarray(w, dtype=jnp.float32).T)
        off += d
    b_big = jnp.full((1, n * c_pad), _PAD_BIAS, dtype=jnp.float32)
    for i, b in enumerate(biases):
        b_big = b_big.at[0, i * c_pad:i * c_pad + C].set(
            jnp.asarray(b, dtype=jnp.float32))
    return w_big.astype(dtype), b_big


def decoupled_linear_apply(feats_per_space, w_big, b_big, *, num_clusters,
                           block_b=512, block_k=1024, approx_recip=True,
                           vmem_cap_bytes=40 << 20):
    """feats_per_space: list of (B, D_i) arrays.  Returns (B, C, N) softmax probs."""
    n = len(feats_per_space)
    C = num_clusters
    B = int(feats_per_space[0].shape[0])
    assert all(int(f.shape[0]) == B for f in feats_per_space), \
        "all representation spaces must share the same batch size"
    D_total = int(w_big.shape[0])
    W_out = int(w_big.shape[1])
    c_pad = W_out // n
    x_dtype = w_big.dtype                                 # feats match weight dtype

    # ---- per-call layout plumbing (cheap; weight packing already hoisted) ----
    x = jnp.concatenate([f.astype(x_dtype) for f in feats_per_space], axis=1)
    assert int(x.shape[1]) == D_total

    # ---- batch tiling ----
    if B <= block_b:
        if B > 16:
            # v7x megacore: guarantee >= 2 steps on the "parallel" batch axis.
            tb = _round_up(pl.cdiv(B, 2), _SUBLANE)
        else:
            tb = B                                         # single full-B block
    else:
        tb = block_b

    # ---- K (contraction) tiling ----
    bk = D_total if D_total <= block_k else block_k        # block_k: multiple of 128
    nk = pl.cdiv(D_total, bk)
    d_pad = nk * bk

    # ---- explicit VMEM budget (v5e 16 MiB scoped default, v7x 64 MiB phys) ----
    def _vmem_need(tb_, bk_):
        it = jnp.dtype(x_dtype).itemsize
        return (2 * tb_ * bk_ * it          # double-buffered feats stream
                + 2 * bk_ * W_out * it      # double-buffered weight stream
                + 2 * W_out * 4             # bias
                + 2 * tb_ * W_out * 4       # double-buffered output stream
                + tb_ * W_out * 4)          # f32 accumulator scratch
    while _vmem_need(tb, bk) > vmem_cap_bytes and tb > _SUBLANE:
        tb = max(_SUBLANE, tb // 2)
    nb = pl.cdiv(B, tb)
    b_pad = nb * tb
    vmem_limit = int(min(max(2 * _vmem_need(tb, bk), 16 << 20), 56 << 20))

    if b_pad != B or d_pad != D_total:
        x = jnp.pad(x, ((0, b_pad - B), (0, d_pad - D_total)))
    w_in = jnp.pad(w_big, ((0, d_pad - D_total), (0, 0))) if d_pad != D_total else w_big

    out_flat = pl.pallas_call(
        partial(_fused_decoupled_linear_kernel, n, c_pad, approx_recip),
        out_shape=jax.ShapeDtypeStruct((b_pad, W_out), jnp.float32),
        grid=(nb, nk),
        in_specs=[
            pl.BlockSpec((tb, bk), lambda b, k: (b, k)),        # feats tile
            pl.BlockSpec((bk, W_out), lambda b, k: (k, 0)),     # weight K slice
            pl.BlockSpec((1, W_out), lambda b, k: (0, 0)),      # bias (resident)
        ],
        out_specs=pl.BlockSpec((tb, W_out), lambda b, k: (b, 0)),
        scratch_shapes=[pltpu.VMEM((tb, W_out), jnp.float32)],
        compiler_params=pltpu.CompilerParams(
            dimension_semantics=("parallel", "arbitrary"),
            vmem_limit_bytes=vmem_limit),
    )(x, w_in, b_big)

    # Drop batch padding and lane padding, then match torch.stack(..., dim=-1):
    # (B, N*C_pad) -> (B, N, C_pad) -> (B, N, C) -> (B, C, N)
    out = out_flat[:B].reshape(B, n, c_pad)[:, :, :C]
    return jnp.transpose(out, (0, 2, 1))


def _reference(feats_per_space, weights, biases):
    ys = [f @ w.T + b for f, w, b in zip(feats_per_space, weights, biases)]
    stacked = jnp.stack(ys, axis=-1)                  # (B, C, N)
    return jax.nn.softmax(stacked, axis=-2)           # softmax over clusters


if __name__ == "__main__":
    key = jax.random.PRNGKey(0)

    repr_dims = [32, 16, 8]
    num_clusters = 12
    batch = 4

    feats, weights, biases = [], [], []
    for d in repr_dims:
        key, kf, kw, kb = jax.random.split(key, 4)
        feats.append(jax.random.normal(kf, (batch, d), dtype=jnp.float32))
        # torch-layout Linear(d, num_clusters) params: weight (C, d), bias (C,)
        weights.append(
            jax.random.normal(kw, (num_clusters, d), dtype=jnp.float32) / jnp.sqrt(d)
        )
        biases.append(jax.random.normal(kb, (num_clusters,), dtype=jnp.float32) * 0.1)

    # One-time parameter packing (hoisted out of the per-call path).
    w_big, b_big = prepare_decoupled_linear_params(weights, biases, num_clusters)

    fwd = jax.jit(partial(decoupled_linear_apply, num_clusters=num_clusters))
    out = fwd(feats, w_big, b_big)
    out = jax.block_until_ready(out)

    ref = _reference(feats, weights, biases)
    assert out.shape == (batch, num_clusters, len(repr_dims)), out.shape
    # Tolerance loosened slightly vs pure-f32 because of the EUP approximate
    # reciprocal in the softmax denominator (probabilities are in [0, 1]).
    assert jnp.allclose(out, ref, atol=5e-3, rtol=5e-3), "mismatch vs reference"

    print("KERNEL_OK")
</pallas_src>

<mosaic_0001>
module attributes {stable_mosaic.version = 11 : i64} {
  func.func @_fused_decoupled_linear_kernel(%arg0: i32, %arg1: i32, %arg2: memref<4x56xf32, #tpu.memory_space<vmem>>, %arg3: memref<56x384xf32, #tpu.memory_space<vmem>>, %arg4: memref<1x384xf32, #tpu.memory_space<vmem>>, %arg5: memref<4x384xf32, #tpu.memory_space<vmem>>, %arg6: memref<4x384xf32, #tpu.memory_space<vmem>>) attributes {dimension_semantics = [#tpu.dimension_semantics<parallel>, #tpu.dimension_semantics<arbitrary>], iteration_bounds = array<i64: 1, 1>, scalar_prefetch = 0 : i64, scratch_operands = 1 : i64, tpu.core_type = #tpu.core_type<tc>, window_params = [{transform_indices = @transform_0, window_bounds = array<i64: 4, 56>}, {transform_indices = @transform_1, window_bounds = array<i64: 56, 384>}, {pipeline_mode = #tpu.pipeline_mode<synchronous>, transform_indices = @transform_2, window_bounds = array<i64: 1, 384>}, {transform_indices = @transform_3, window_bounds = array<i64: 4, 384>}]} {
    %c0_i32 = arith.constant 0 : i32
    %0 = arith.cmpi eq, %arg1, %c0_i32 : i32
    %1 = arith.extui %0 : i1 to i32
    %c0_i32_0 = arith.constant 0 : i32
    %2 = arith.cmpi ne, %1, %c0_i32_0 : i32
    scf.if %2 {
      %cst_10 = arith.constant 0.000000e+00 : f32
      %12 = vector.broadcast %cst_10 : f32 to vector<4x384xf32>
      %c0_11 = arith.constant 0 : index
      %c0_12 = arith.constant 0 : index
      %13 = vector.load %arg6[%c0_11, %c0_12] : memref<4x384xf32, #tpu.memory_space<vmem>>, vector<4x384xf32>
      tpu.vector_store %arg6[%c0_11, %c0_12], %12 {strides = array<i32>} : memref<4x384xf32, #tpu.memory_space<vmem>>, vector<4x384xf32>,
    } else {
    }
    %c0 = arith.constant 0 : index
    %c0_1 = arith.constant 0 : index
    %3 = vector.load %arg6[%c0, %c0_1] : memref<4x384xf32, #tpu.memory_space<vmem>>, vector<4x384xf32>
    %c0_2 = arith.constant 0 : index
    %c0_3 = arith.constant 0 : index
    %4 = vector.load %arg2[%c0_2, %c0_3] : memref<4x56xf32, #tpu.memory_space<vmem>>, vector<4x56xf32>
    %c0_4 = arith.constant 0 : index
    %c0_5 = arith.constant 0 : index
    %5 = vector.load %arg3[%c0_4, %c0_5] : memref<56x384xf32, #tpu.memory_space<vmem>>, vector<56x384xf32>
    %cst = arith.constant dense<0.000000e+00> : vector<4x384xf32>
    %6 = tpu.matmul %4, %5, %cst {dimension_numbers = #tpu.dot_dimension_numbers<[1], [0], [0], [1], [0, 0, 1, 1], [], []>} : vector<4x56xf32>, vector<56x384xf32>, vector<4x384xf32> -> vector<4x384xf32>
    %7 = arith.addf %3, %6 : vector<4x384xf32>
    %c0_6 = arith.constant 0 : index
    %c0_7 = arith.constant 0 : index
    %8 = vector.load %arg6[%c0_6, %c0_7] : memref<4x384xf32, #tpu.memory_space<vmem>>, vector<4x384xf32>
    tpu.vector_store %arg6[%c0_6, %c0_7], %7 {strides = array<i32>} : memref<4x384xf32, #tpu.memory_space<vmem>>, vector<4x384xf32>,
    %c0_i32_8 = arith.constant 0 : i32
    %9 = arith.cmpi eq, %arg1, %c0_i32_8 : i32
    %10 = arith.extui %9 : i1 to i32
    %c0_i32_9 = arith.constant 0 : i32
    %11 = arith.cmpi ne, %10, %c0_i32_9 : i32
    scf.if %11 {
      %c0_10 = arith.constant 0 : index
      %c0_11 = arith.constant 0 : index
      %12 = vector.load %arg6[%c0_10, %c0_11] : memref<4x384xf32, #tpu.memory_space<vmem>>, vector<4x384xf32>
      %c0_12 = arith.constant 0 : index
      %c0_13 = arith.constant 0 : index
      %13 = vector.load %arg4[%c0_12, %c0_13] : memref<1x384xf32, #tpu.memory_space<vmem>>, vector<1x384xf32>
      %14 = vector.broadcast %13 : vector<1x384xf32> to vector<4x384xf32>
      %15 = arith.addf %12, %14 : vector<4x384xf32>
      %16 = vector.extract_strided_slice %15 {offsets = [0, 0], sizes = [4, 128], strides = [1, 1]} : vector<4x384xf32> to vector<4x128xf32>
      %cst_14 = arith.constant dense<0xFF800000> : vector<4xf32>
      %17 = vector.multi_reduction <maximumf>, %16, %cst_14 [1] : vector<4x128xf32> to vector<4xf32>
      %18 = vector.shape_cast %17 : vector<4xf32> to vector<4x1xf32>
      %19 = vector.broadcast %18 : vector<4x1xf32> to vector<4x128xf32>
      %20 = arith.subf %16, %19 : vector<4x128xf32>
      %21 = math.exp %20 : vector<4x128xf32>
      %cst_15 = arith.constant dense<0.000000e+00> : vector<4xf32>
      %22 = vector.multi_reduction <add>, %21, %cst_15 [1] : vector<4x128xf32> to vector<4xf32>
      %23 = vector.shape_cast %22 : vector<4xf32> to vector<4x1xf32>
      %24 = tpu.reciprocal %23 {approx = true} : vector<4x1xf32> -> vector<4x1xf32>
      %25 = vector.broadcast %24 : vector<4x1xf32> to vector<4x128xf32>
      %26 = arith.mulf %21, %25 : vector<4x128xf32>
      %c0_16 = arith.constant 0 : index
      %c0_17 = arith.constant 0 : index
      %27 = vector.load %arg5[%c0_16, %c0_17] : memref<4x384xf32, #tpu.memory_space<vmem>>, vector<4x128xf32>
      tpu.vector_store %arg5[%c0_16, %c0_17], %26 {strides = array<i32>} : memref<4x384xf32, #tpu.memory_space<vmem>>, vector<4x128xf32>,
      %28 = vector.extract_strided_slice %15 {offsets = [0, 128], sizes = [4, 128], strides = [1, 1]} : vector<4x384xf32> to vector<4x128xf32>
      %cst_18 = arith.constant dense<0xFF800000> : vector<4xf32>
      %29 = vector.multi_reduction <maximumf>, %28, %cst_18 [1] : vector<4x128xf32> to vector<4xf32>
      %30 = vector.shape_cast %29 : vector<4xf32> to vector<4x1xf32>
      %31 = vector.broadcast %30 : vector<4x1xf32> to vector<4x128xf32>
      %32 = arith.subf %28, %31 : vector<4x128xf32>
      %33 = math.exp %32 : vector<4x128xf32>
      %cst_19 = arith.constant dense<0.000000e+00> : vector<4xf32>
      %34 = vector.multi_reduction <add>, %33, %cst_19 [1] : vector<4x128xf32> to vector<4xf32>
      %35 = vector.shape_cast %34 : vector<4xf32> to vector<4x1xf32>
      %36 = tpu.reciprocal %35 {approx = true} : vector<4x1xf32> -> vector<4x1xf32>
      %37 = vector.broadcast %36 : vector<4x1xf32> to vector<4x128xf32>
      %38 = arith.mulf %33, %37 : vector<4x128xf32>
      %c0_20 = arith.constant 0 : index
      %c128 = arith.constant 128 : index
      %39 = vector.load %arg5[%c0_20, %c128] : memref<4x384xf32, #tpu.memory_space<vmem>>, vector<4x128xf32>
      tpu.vector_store %arg5[%c0_20, %c128], %38 {strides = array<i32>} : memref<4x384xf32, #tpu.memory_space<vmem>>, vector<4x128xf32>,
      %40 = vector.extract_strided_slice %15 {offsets = [0, 256], sizes = [4, 128], strides = [1, 1]} : vector<4x384xf32> to vector<4x128xf32>
      %cst_21 = arith.constant dense<0xFF800000> : vector<4xf32>
      %41 = vector.multi_reduction <maximumf>, %40, %cst_21 [1] : vector<4x128xf32> to vector<4xf32>
      %42 = vector.shape_cast %41 : vector<4xf32> to vector<4x1xf32>
      %43 = vector.broadcast %42 : vector<4x1xf32> to vector<4x128xf32>
      %44 = arith.subf %40, %43 : vector<4x128xf32>
      %45 = math.exp %44 : vector<4x128xf32>
      %cst_22 = arith.constant dense<0.000000e+00> : vector<4xf32>
      %46 = vector.multi_reduction <add>, %45, %cst_22 [1] : vector<4x128xf32> to vector<4xf32>
      %47 = vector.shape_cast %46 : vector<4xf32> to vector<4x1xf32>
      %48 = tpu.reciprocal %47 {approx = true} : vector<4x1xf32> -> vector<4x1xf32>
      %49 = vector.broadcast %48 : vector<4x1xf32> to vector<4x128xf32>
      %50 = arith.mulf %45, %49 : vector<4x128xf32>
      %c0_23 = arith.constant 0 : index
      %c256 = arith.constant 256 : index
      %51 = vector.load %arg5[%c0_23, %c256] : memref<4x384xf32, #tpu.memory_space<vmem>>, vector<4x128xf32>
      tpu.vector_store %arg5[%c0_23, %c256], %50 {strides = array<i32>} : memref<4x384xf32, #tpu.memory_space<vmem>>, vector<4x128xf32>,
    } else {
    }
    return
  }
  func.func @transform_0(%arg0: i32, %arg1: i32) -> (i32, i32) {
    %c0_i32 = arith.constant 0 : i32
    return %arg0, %arg1 : i32, i32
  }
  func.func @transform_1(%arg0: i32, %arg1: i32) -> (i32, i32) {
    %c0_i32 = arith.constant 0 : i32
    %c0_i32_0 = arith.constant 0 : i32
    return %arg1, %c0_i32 : i32, i32
  }
  func.func @transform_2(%arg0: i32, %arg1: i32) -> (i32, i32) {
    %c0_i32 = arith.constant 0 : i32
    %c0_i32_0 = arith.constant 0 : i32
    %c0_i32_1 = arith.constant 0 : i32
    return %c0_i32, %c0_i32_0 : i32, i32
  }
  func.func @transform_3(%arg0: i32, %arg1: i32) -> (i32, i32) {
    %c0_i32 = arith.constant 0 : i32
    %c0_i32_0 = arith.constant 0 : i32
    return %arg0, %c0_i32 : i32, i32
  }
}

</mosaic_0001>

<llo_original>
// kernel: decoupled_linear_apply.1
$region0: #{decoupled_linear_apply.1}
  #allocation0 [shape = 'u32[]', space=smem, size = 0x4, offset = 0x4, fixed_abs, tag = 'smem constant byte address 0x4 - core index']
  #allocation1 [shape = 'u32[144,128]{1,0:T(1,128)}', space=vmem, size = 0x12000, scoped, tag = 'internal scratch']
  #allocation2 [shape = 'f32[4,384]{1,0:T(4,128)}', space=vmem, size = 0x1800, scoped, tag = 'scratch operand']
  %s0 = inlined_call_operand.vmem [shape: f32[4,56], index: 0, kind: input, shape index: {}]
  %s1 = inlined_call_operand.hbm [shape: f32[56,384], index: 1, kind: input, shape index: {}]
  %s2 = inlined_call_operand.vmem [shape: f32[1,384], index: 2, kind: input, shape index: {}]
  %s3 = inlined_call_operand.vmem [shape: f32[4,384], index: 3, kind: output, shape index: {}]
  %s4 = sld [smem:[#allocation0]]
  $region34: #{decoupled_linear_apply.1} parent=0
    _
  %s6 = ssub.s32 1, %s4
  %s7 = scalar_select 0, %s6, %s4
  $region1: #{decoupled_linear_apply.1} parent=0
    #allocation3 [shape = 'u8[86016]{0}', space=vmem, size = 0x15000, scoped, tag = 'input window, operand 1, single buffered']
    #allocation4 [shape = 's32[1]{0}', space=sflag, size = 0x4, scoped, tag = 'scoped memory for decoupled_linear_apply.1']
    %8 = vsyncpa [#allocation4], 0
    // Predicated region
    $region2: #{decoupled_linear_apply.1} parent=1 // pred_check
      _
    $region3: #{decoupled_linear_apply.1} parent=1 // pred_check_branch
      %10 = sbr.rel (0) target = $region5
    $region4: #{decoupled_linear_apply.1} parent=1 // pred_region
      _
    $region5: #{decoupled_linear_apply.1} parent=1 // pred_fallthru
      _
    // Predicated region
    $region6: #{decoupled_linear_apply.1} parent=1 // pred_check
      _
    $region7: #{decoupled_linear_apply.1} parent=1 // pred_check_branch
      %12 = sbr.rel (0) target = $region9
    $region8: #{decoupled_linear_apply.1} parent=1 // pred_region
      %s14 = ssub.s32 2688, 2688
      %15 = vsyncadd [#allocation4], %s14
      %s16 = sshll.u32 [#allocation3], 4
      %s17 = int_to_ptr.vmem [resolvable:$true] %s16
      %22 = dma.hbm_to_vmem [thread:$0]  %s1, 2688, %s17, [#allocation4], 384, 384, 24
    $region9: #{decoupled_linear_apply.1} parent=1 // pred_fallthru
      _
    // Predicated region
    $region10: #{decoupled_linear_apply.1} parent=1 // pred_check
      _
    $region11: #{decoupled_linear_apply.1} parent=1 // pred_check_branch
      %24 = sbr.rel (0) target = $region13
    $region12: #{decoupled_linear_apply.1} parent=1 // pred_region
      _
    $region13: #{decoupled_linear_apply.1} parent=1 // pred_fallthru
      _
    // Predicated region
    $region14: #{decoupled_linear_apply.1} parent=1 // pred_check
      _
    $region15: #{decoupled_linear_apply.1} parent=1 // pred_check_branch
      %26 = sbr.rel (0) target = $region17
    $region16: #{decoupled_linear_apply.1} parent=1 // pred_region
      %27 = dma.done [#allocation4], 2688
    $region17: #{decoupled_linear_apply.1} parent=1 // pred_fallthru
      _
    %p28 = scmp.eq.s32.totalorder 0, 0
    // Predicated region
    $region18: #{decoupled_linear_apply.1} parent=1 // pred_check
      %p29 = pneg %p28
    $region19: #{decoupled_linear_apply.1} parent=1 // pred_check_branch
      %31 = sbr.rel (%p29) target = $region21
    $region20: #{decoupled_linear_apply.1} parent=1 // pred_region
      %32 = vst [vmem:[#allocation2] sm:$0xff] 0.0
      %33 = vst [vmem:[#allocation2 + $0x8] sm:$0xf] 0.0
    $region21: #{decoupled_linear_apply.1} parent=1 // pred_fallthru
      _
    %v34 = vld [vmem:[#allocation2] sm:$0xff]
    %v35 = vld [vmem:[#allocation2 + $0x8] sm:$0xf]
    %v36 = vld [vmem:[%s0] sm:$0xf]
    %v37 = vld [vmem:[#allocation3] sm:$0xff]
    %v38 = vld [vmem:[#allocation3 + $0x8] sm:$0xff]
    %v39 = vld [vmem:[#allocation3 + $0x10] sm:$0xff]
    %v40 = vld [vmem:[#allocation3 + $0x18] sm:$0xff]
    %v41 = vld [vmem:[#allocation3 + $0x20] sm:$0xff]
    %v42 = vld [vmem:[#allocation3 + $0x28] sm:$0xff]
    %v43 = vld [vmem:[#allocation3 + $0x30] sm:$0xff]
    %v44 = vld [vmem:[#allocation3 + $0x38] sm:$0xff]
    %v45 = vld [vmem:[#allocation3 + $0x40] sm:$0xff]
    %v46 = vld [vmem:[#allocation3 + $0x48] sm:$0xff]
    %v47 = vld [vmem:[#allocation3 + $0x50] sm:$0xff]
    %v48 = vld [vmem:[#allocation3 + $0x58] sm:$0xff]
    %v49 = vld [vmem:[#allocation3 + $0x60] sm:$0xff]
    %v50 = vld [vmem:[#allocation3 + $0x68] sm:$0xff]
    %v51 = vld [vmem:[#allocation3 + $0x70] sm:$0xff]
    %v52 = vld [vmem:[#allocation3 + $0x78] sm:$0xff]
    %v53 = vld [vmem:[#allocation3 + $0x80] sm:$0xff]
    %v54 = vld [vmem:[#allocation3 + $0x88] sm:$0xff]
    %v55 = vld [vmem:[#allocation3 + $0x90] sm:$0xff]
    %v56 = vld [vmem:[#allocation3 + $0x98] sm:$0xff]
    %v57 = vld [vmem:[#allocation3 + $0xa0] sm:$0xff]
    %vm58 = vcmask 457728
    %v60 = vsel %vm58, %v36, 0
    %62 = vmatprep.subr.mxu0 %v38
    %63 = vmatpush1.msra.mxu0 %v37
    %64 = vmatprep.subr.mxu0 %v41
    %65 = vmatpush1.msra.mxu0 %v40
    %66 = vmatprep.subr.mxu0 %v44
    %67 = vmatpush1.msra.mxu0 %v43
    %68 = vmatprep.subr.mxu0 %v47
    %69 = vmatpush1.msra.mxu0 %v46
    %70 = vmatprep.subr.mxu0 %v50
    %71 = vmatpush1.msra.mxu0 %v49
    %72 = vmatprep.subr.mxu0 %v53
    %73 = vmatpush1.msra.mxu0 %v52
    %74 = vmatprep.subr.mxu0 %v56
    %75 = vmatpush1.msra.mxu0 %v55
    %76 = vmatprep.subr.mxu0 0.0
    %77 = vmatpush1.msra.mxu0 0.0
    %78 = vmatprep.subr.mxu0 0.0
    %79 = vmatpush1.msra.mxu0 0.0
    %80 = vmatprep.subr.mxu0 0.0
    %81 = vmatpush1.msra.mxu0 0.0
    %82 = vmatprep.subr.mxu0 0.0
    %83 = vmatpush1.msra.mxu0 0.0
    %84 = vmatprep.subr.mxu0 0.0
    %85 = vmatpush1.msra.mxu0 0.0
    %86 = vmatprep.subr.mxu0 0.0
    %87 = vmatpush1.msra.mxu0 0.0
    %88 = vmatprep.subr.mxu0 0.0
    %89 = vmatpush1.msra.mxu0 0.0
    %90 = vmatprep.subr.mxu0 0.0
    %91 = vmatpush1.msra.mxu0 0.0
    %92 = vmatprep.subr.mxu0 0.0
    %93 = vmatpush1.msra.mxu0 0.0
    %94 = vmatprep.subr.mxu0 0.0
    %95 = vmatpush1.msra.mxu0 0.0
    %96 = vmatprep.subr.mxu0 0.0
    %97 = vmatpush1.msra.mxu0 0.0
    %98 = vmatprep.subr.mxu0 0.0
    %99 = vmatpush1.msra.mxu0 0.0
    %100 = vmatprep.subr.mxu0 0.0
    %101 = vmatpush1.msra.mxu0 0.0
    %102 = vmatprep.subr.mxu0 0.0
    %103 = vmatpush1.msra.mxu0 0.0
    %104 = vmatprep.subr.mxu0 0.0
    %105 = vmatpush1.msra.mxu0 0.0
    %106 = vmatprep.subr.mxu0 0.0
    %107 = vmatpush1.msra.mxu0 0.0
    %108 = vmatprep.subr.mxu0 0.0
    %109 = vmatpush1.msra.mxu0 0.0
    %110 = vmatprep.subr.mxu0 0.0
    %111 = vmatpush1.msra.mxu0 0.0
    %112 = vmatprep.subr.mxu0 0.0
    %113 = vmatpush1.msra.mxu0 0.0
    %114 = vmatprep.subr.mxu0 0.0
    %115 = vmatpush1.msra.mxu0 0.0
    %116 = vmatprep.subr.mxu0 0.0
    %117 = vmatpush1.msra.mxu0 0.0
    %118 = vmatprep.subr.mxu0 0.0
    %119 = vmatpush1.msra.mxu0 0.0
    %120 = vmatprep.subr.mxu0 0.0
    %121 = vmatpush1.msra.mxu0 0.0
    %122 = vmatprep.subr.mxu0 0.0
    %123 = vmatpush1.msra.mxu0 0.0
    %124 = vmatprep.subr.mxu0 0.0
    %125 = vmatpush1.msra.mxu0 0.0
    %126 = vmatprep.mubr.f32.mxu0 0.0
    %127 = vmatmul.mubr.f32.gmra.mrb[0].mxu0 %v60
    %v128 = vpop.f32.mrb[0].mxu0
    %v129 = vadd.f32 0.0, %v128
    %v130 = vpop.f32.mrb[0].mxu0
    %v131 = vadd.f32 0.0, %v130
    %132 = vdwg.mxu0
    %133 = vmatprep.subr.mxu0 0.0
    %134 = vmatpush1.msra.mxu0 %v39
    %135 = vmatprep.subr.mxu0 0.0
    %136 = vmatpush1.msra.mxu0 %v42
    %137 = vmatprep.subr.mxu0 0.0
    %138 = vmatpush1.msra.mxu0 %v45
    %139 = vmatprep.subr.mxu0 0.0
    %140 = vmatpush1.msra.mxu0 %v48
    %141 = vmatprep.subr.mxu0 0.0
    %142 = vmatpush1.msra.mxu0 %v51
    %143 = vmatprep.subr.mxu0 0.0
    %144 = vmatpush1.msra.mxu0 %v54
    %145 = vmatprep.subr.mxu0 0.0
    %146 = vmatpush1.msra.mxu0 %v57
    %147 = vmatprep.subr.mxu0 0.0
    %148 = vmatpush1.msra.mxu0 0.0
    %149 = vmatprep.subr.mxu0 0.0
    %150 = vmatpush1.msra.mxu0 0.0
    %151 = vmatprep.subr.mxu0 0.0
    %152 = vmatpush1.msra.mxu0 0.0
    %153 = vmatprep.subr.mxu0 0.0
    %154 = vmatpush1.msra.mxu0 0.0
    %155 = vmatprep.subr.mxu0 0.0
    %156 = vmatpush1.msra.mxu0 0.0
    %157 = vmatprep.subr.mxu0 0.0
    %158 = vmatpush1.msra.mxu0 0.0
    %159 = vmatprep.subr.mxu0 0.0
    %160 = vmatpush1.msra.mxu0 0.0
    %161 = vmatprep.subr.mxu0 0.0
    %162 = vmatpush1.msra.mxu0 0.0
    %163 = vmatprep.subr.mxu0 0.0
    %164 = vmatpush1.msra.mxu0 0.0
    %165 = vmatprep.subr.mxu0 0.0
    %166 = vmatpush1.msra.mxu0 0.0
    %167 = vmatprep.subr.mxu0 0.0
    %168 = vmatpush1.msra.mxu0 0.0
    %169 = vmatprep.subr.mxu0 0.0
    %170 = vmatpush1.msra.mxu0 0.0
    %171 = vmatprep.subr.mxu0 0.0
    %172 = vmatpush1.msra.mxu0 0.0
    %173 = vmatprep.subr.mxu0 0.0
    %174 = vmatpush1.msra.mxu0 0.0
    %175 = vmatprep.subr.mxu0 0.0
    %176 = vmatpush1.msra.mxu0 0.0
    %177 = vmatprep.subr.mxu0 0.0
    %178 = vmatpush1.msra.mxu0 0.0
    %179 = vmatprep.subr.mxu0 0.0
    %180 = vmatpush1.msra.mxu0 0.0
    %181 = vmatprep.subr.mxu0 0.0
    %182 = vmatpush1.msra.mxu0 0.0
    %183 = vmatprep.subr.mxu0 0.0
    %184 = vmatpush1.msra.mxu0 0.0
    %185 = vmatprep.subr.mxu0 0.0
    %186 = vmatpush1.msra.mxu0 0.0
    %187 = vmatprep.subr.mxu0 0.0
    %188 = vmatpush1.msra.mxu0 0.0
    %189 = vmatprep.subr.mxu0 0.0
    %190 = vmatpush1.msra.mxu0 0.0
    %191 = vmatprep.subr.mxu0 0.0
    %192 = vmatpush1.msra.mxu0 0.0
    %193 = vmatprep.subr.mxu0 0.0
    %194 = vmatpush1.msra.mxu0 0.0
    %195 = vmatprep.subr.mxu0 0.0
    %196 = vmatpush1.msra.mxu0 0.0
    %197 = vmatprep.mubr.f32.mxu0 0.0
    %198 = vmatmul.mubr.f32.gmra.mrb[0].mxu0 %v60
    %v199 = vpop.f32.mrb[0].mxu0
    %v200 = vadd.f32 0.0, %v199
    %v201 = vpop.f32.mrb[0].mxu0
    %202 = vdwg.mxu0
    %v205 = vcombine.low %v129, %v131
    %v207 = vadd.f32 %v34, %v205
    %v208 = vadd.f32 %v35, %v200
    %209 = vst [vmem:[#allocation2] sm:$0xff] %v207
    %210 = vst [vmem:[#allocation2 + $0x8] sm:$0xf] %v208
    // Predicated region
    $region22: #{decoupled_linear_apply.1} parent=1 // pred_check
      %p211 = pneg %p28
    $region23: #{decoupled_linear_apply.1} parent=1 // pred_check_branch
      %213 = sbr.rel (%p211) target = $region25
    $region24: #{decoupled_linear_apply.1} parent=1 // pred_region
      %v214 = vld [vmem:[#allocation2] sm:$0xff]
      %v215 = vld [vmem:[#allocation2 + $0x8] sm:$0xf]
      %v216 = vld [vmem:[%s2] sm:$0x7]
      %v218 = vlaneseq
      %v219 = vshrl.u32 %v218, 7
      %v220 = vsub.s32 0, %v219
      %v221 = vrot.slane %v216, %v220
      %v222 = vlaneseq
      %v223 = vshrl.u32 %v222, 7
      %v224 = vsub.s32 1, %v223
      %v225 = vrot.slane %v216, %v224
      %v226 = vlaneseq
      %v227 = vshrl.u32 %v226, 7
      %v228 = vsub.s32 2, %v227
      %v229 = vrot.slane %v216, %v228
      %v231 = vcombine.low %v221, %v225
      %v233 = vadd.f32 %v214, %v231
      %v234 = vadd.f32 %v215, %v229
      %vm235 = vcmask 1043456
      %v236 = vsel %vm235, %v233, -inf
      %237 = vmax.xlane.f32.xlu0 %v236
      %v238 = vpop.xlane.xlu0 %237
      %v239 = vsub.f32 %v233, %v238
      %v240 = vmul.f32 %v239, 1.442695
      %v241 = vpow.pop %v240
      %v242 = vsel %vm235, %v241, 0.0
      %243 = vadd.xlane.f32.xlu0 %v242
      %v244 = vpop.xlane.xlu0 %243
      %v245 = vrcp.pop %v244
      %v246 = vmul.f32 %v241, %v245
      %247 = vst [vmem:[%s3] sm:$0xf] %v246
      %v249 = vcombine.high %v233, %v233
      %v251 = vsel %vm235, %v249, -inf
      %252 = vmax.xlane.f32.xlu0 %v251
      %v253 = vpop.xlane.xlu0 %252
      %v254 = vrot.slane %v233, 4
      %v256 = vsub.f32 %v254, %v253
      %v257 = vmul.f32 %v256, 1.442695
      %v258 = vpow.pop %v257
      %v259 = vsel %vm235, %v258, 0.0
      %260 = vadd.xlane.f32.xlu0 %v259
      %v261 = vpop.xlane.xlu0 %260
      %v262 = vrcp.pop %v261
      %v263 = vmul.f32 %v258, %v262
      %264 = vst [vmem:[%s3 + $0x4] sm:$0xf] %v263
      %v265 = vsel %vm235, %v234, -inf
      %266 = vmax.xlane.f32.xlu0 %v265
      %v267 = vpop.xlane.xlu0 %266
      %v268 = vsub.f32 %v234, %v267
      %v269 = vmul.f32 %v268, 1.442695
      %v270 = vpow.pop %v269
      %v271 = vsel %vm235, %v270, 0.0
      %272 = vadd.xlane.f32.xlu0 %v271
      %v273 = vpop.xlane.xlu0 %272
      %v274 = vrcp.pop %v273
      %v275 = vmul.f32 %v270, %v274
      %276 = vst [vmem:[%s3 + $0x8] sm:$0xf] %v275
    $region25: #{decoupled_linear_apply.1} parent=1 // pred_fallthru
      _
    // Predicated region
    $region26: #{decoupled_linear_apply.1} parent=1 // pred_check
      _
    $region27: #{decoupled_linear_apply.1} parent=1 // pred_check_branch
      %278 = sbr.rel (0) target = $region29
    $region28: #{decoupled_linear_apply.1} parent=1 // pred_region
      _
    $region29: #{decoupled_linear_apply.1} parent=1 // pred_fallthru
      _
    // Predicated region
    $region30: #{decoupled_linear_apply.1} parent=1 // pred_check
      _
    $region31: #{decoupled_linear_apply.1} parent=1 // pred_check_branch
      %280 = sbr.rel (0) target = $region33
    $region32: #{decoupled_linear_apply.1} parent=1 // pred_region
      _
    $region33: #{decoupled_linear_apply.1} parent=1 // pred_fallthru
      _
    %281 = vsyncpa [#allocation4], 1

</llo_original>
